<compile_context>
chip_gen: v5e
topology: v5e:2x2
jax: 0.10.0
libtpu: 0.0.40
codegen_flags: <defaults>
</compile_context>

<pallas_src>
import jax
import jax.numpy as jnp
import numpy as np
from jax.experimental import pallas as pl
from jax.experimental.pallas import tpu as pltpu


# ----------------------------------------------------------------------------
# Pallas kernel: one (F-tile, batch-element) grid step of the full forward.
# ----------------------------------------------------------------------------
def foldingnet_kernel(hseed_ref,            # (H, Ft)   f32, blocked along F
                      b1eff_ref,            # (1, H, 1) f32, blocked along B
                      b4eff_ref,            # (1, H, 1) f32, blocked along B
                      w2_ref, b2_ref,       # (H2, H) wd, (H2, 1) f32
                      w3_ref, b3_ref,       # (3, H2) wd, (3, 1)  f32
                      w4p_ref,              # (H, 3)  f32   (VPU path)
                      w5_ref, b5_ref,       # (H2, H) wd, (H2, 1) f32
                      w6_ref, b6_ref,       # (3, H2) wd, (3, 1)  f32
                      out_ref):             # (1, 3, Ft)
    # Activation dtype follows the MXU weight dtype (bf16 on v6e/v7x path,
    # f32 on v5e / exact path); accumulation is always f32.
    act_dtype = w2_ref.dtype

    def mm(w_ref, x):                       # MXU matmul, f32 accumulation
        return jnp.dot(w_ref[...], x, preferred_element_type=jnp.float32)

    # ---- grid_to_points -----------------------------------------------------
    # Layer 1: seed GEMM was hoisted to the wrapper; the global-feature part
    # lives in the per-batch effective bias.  Only bias-add + ReLU here.
    h = jnp.maximum(hseed_ref[...] + b1eff_ref[0], 0.0).astype(act_dtype)   # (H, Ft)
    h = jnp.maximum(mm(w2_ref, h) + b2_ref[...], 0.0).astype(act_dtype)     # (H2, Ft)
    pts = mm(w3_ref, h) + b3_ref[...]                                       # (3, Ft) f32

    # ---- refine_points ------------------------------------------------------
    # Layer 4: K=3 contraction as three broadcast MACs on the VPU (an MXU
    # matmul here would waste >98% of the contraction depth).
    w4p = w4p_ref[...]                                                      # (H, 3) f32
    h = (w4p[:, 0:1] * pts[0:1, :]
         + w4p[:, 1:2] * pts[1:2, :]
         + w4p[:, 2:3] * pts[2:3, :]
         + b4eff_ref[0])
    h = jnp.maximum(h, 0.0).astype(act_dtype)                               # (H, Ft)
    h = jnp.maximum(mm(w5_ref, h) + b5_ref[...], 0.0).astype(act_dtype)     # (H2, Ft)
    pts = mm(w6_ref, h) + b6_ref[...]                                       # (3, Ft)

    out_ref[0] = pts.astype(out_ref.dtype)


# ----------------------------------------------------------------------------
# Wrapper
# ----------------------------------------------------------------------------
def foldingnet_forward(global_feats, seeds_cf, p, *, f_tile=None, lane_multiple=256):
    """global_feats: (B, C) f32, seeds_cf: (2, F) f32 -> (B, 3, F) f32."""
    B, _ = global_feats.shape
    F = seeds_cf.shape[1]
    H2, H = p["w2"].shape

    # Hoisted tiny f32 GEMMs (plain XLA): per-batch effective biases of the
    # two concat layers, and the batch-invariant layer-1 seed contribution.
    b1_eff = (jnp.dot(global_feats, p["w1f"].T, precision="highest")
              + p["b1"].T)[:, :, None]                                # (B, H, 1)
    b4_eff = (jnp.dot(global_feats, p["w4f"].T, precision="highest")
              + p["b4"].T)[:, :, None]                                # (B, H, 1)
    h_seed = jnp.dot(p["w1s"], seeds_cf, precision="highest")         # (H, F)

    # Pad F to a lane-aligned multiple (256 = v6e/v7x MXU N tile, also a
    # multiple of v5e's 128): full-width tiles, unmasked stores.  Padded
    # columns carry throwaway values and are sliced off below.
    F_pad = ((F + lane_multiple - 1) // lane_multiple) * lane_multiple
    if F_pad != F:
        h_seed = jnp.pad(h_seed, ((0, 0), (0, F_pad - F)))

    if f_tile is None:
        if F_pad <= 512:
            f_tile = F_pad
        elif F_pad % 512 == 0:
            f_tile = 512
        else:
            f_tile = 256
    assert F_pad % f_tile == 0
    n_f = F_pad // f_tile

    # Resident-once (single-buffered) weights/biases: untiled VMEM specs.
    resident = pl.BlockSpec(memory_space=pltpu.MemorySpace.VMEM)
    beff_spec = pl.BlockSpec((1, H, 1), lambda f, b: (b, 0, 0))

    args = (h_seed, b1_eff, b4_eff,
            p["w2"], p["b2"], p["w3"], p["b3"], p["w4p"],
            p["w5"], p["b5"], p["w6"], p["b6"])
    in_specs = ([pl.BlockSpec((H, f_tile), lambda f, b: (0, f)),
                 beff_spec, beff_spec]
                + [resident] * 9)

    # Explicit VMEM budget (v5e default scoped limit is only 16 MiB; v7x
    # physical VMEM is 64 MiB -- never ask for more than that).
    resident_bytes = sum(int(a.size) * a.dtype.itemsize
                         for a in (p["w2"], p["b2"], p["w3"], p["b3"], p["w4p"],
                                   p["w5"], p["b5"], p["w6"], p["b6"]))
    blocked_bytes = 2 * (H * f_tile * 4 + 3 * f_tile * 4 + 2 * H * 4)   # double-buffered
    live_bytes = (2 * H * f_tile + 2 * H2 * f_tile + 2 * 3 * f_tile) * 4
    vmem_limit = int(min(max(2 * (resident_bytes + blocked_bytes + live_bytes)
                             + (8 << 20), 32 << 20), 64 << 20))

    # Advisory cost estimate for XLA scheduling around the custom call.
    flops = int(B * (2 * F_pad * (2 * H2 * H + 2 * 3 * H2)      # MXU layers
                     + 2 * F_pad * 3 * H))                      # VPU layer 4
    bytes_accessed = int(sum(int(a.size) * a.dtype.itemsize for a in args)
                         + B * 3 * F_pad * 4)

    out_pad = pl.pallas_call(
        foldingnet_kernel,
        out_shape=jax.ShapeDtypeStruct((B, 3, F_pad), jnp.float32),
        grid_spec=pltpu.PrefetchScalarGridSpec(
            num_scalar_prefetch=0,
            grid=(n_f, B),   # F tiles outer: h_seed block reused across inner b steps
            in_specs=in_specs,
            out_specs=pl.BlockSpec((1, 3, f_tile), lambda f, b: (b, 0, f)),
        ),
        compiler_params=pltpu.CompilerParams(
            dimension_semantics=("parallel", "parallel"),
            vmem_limit_bytes=vmem_limit),
        cost_estimate=pl.CostEstimate(flops=flops, transcendentals=0,
                                      bytes_accessed=bytes_accessed),
    )(*args)                                     # (B, 3, F_pad) -- PyTorch layout

    return out_pad[:, :, :F] if F_pad != F else out_pad


# ----------------------------------------------------------------------------
# Deterministic parameter construction (synthetic; no checkpoint load).
# ----------------------------------------------------------------------------
def make_raw_params(key, input_dim, hidden_dim):
    h, h2 = hidden_dim, hidden_dim // 2
    # (cin, cout, has_batchnorm) for the 6 Conv1d layers in module order
    layer_dims = [
        (input_dim + 2, h, True), (h, h2, True), (h2, 3, False),   # grid_to_points
        (input_dim + 3, h, True), (h, h2, True), (h2, 3, False),   # refine_points
    ]
    raw = []
    for cin, cout, has_bn in layer_dims:
        key, k1, k2, k3, k4, k5, k6 = jax.random.split(key, 7)
        p = dict(
            w=jax.random.normal(k1, (cout, cin), jnp.float32) * 0.2,  # (out,in,1) squeezed
            b=jax.random.normal(k2, (cout,), jnp.float32) * 0.1,
            gamma=None, beta=None, mean=None, var=None,
        )
        if has_bn:
            p["gamma"] = 1.0 + 0.1 * jax.random.normal(k3, (cout,), jnp.float32)
            p["beta"] = 0.1 * jax.random.normal(k4, (cout,), jnp.float32)
            p["mean"] = 0.1 * jax.random.normal(k5, (cout,), jnp.float32)
            p["var"] = jnp.abs(jax.random.normal(k6, (cout,), jnp.float32)) + 0.5
        raw.append(p)
    return raw


def fold_layer(p, eps=1e-5):
    """Fold eval-mode BN into the 1x1 conv; return channels-first (cout,cin), (cout,1)."""
    w, b = p["w"], p["b"]
    if p["gamma"] is not None:
        scale = p["gamma"] / jnp.sqrt(p["var"] + eps)
        w = w * scale[:, None]
        b = (b - p["mean"]) * scale + p["beta"]
    return w, b[:, None]


def build_kernel_params(raw, weight_dtype=jnp.float32):
    """Fold BN in f32, split concat weights; cast only the MXU weights."""
    (W1, b1), (W2, b2), (W3, b3), (W4, b4), (W5, b5), (W6, b6) = \
        [fold_layer(p) for p in raw]
    wd = weight_dtype
    return dict(
        # Layer 1: seed GEMM runs in the wrapper (f32); feature part becomes
        # an effective bias.  No MXU weight needed for this layer.
        w1s=W1[:, :2], w1f=W1[:, 2:], b1=b1,                 # concat([seeds, feats])
        w2=W2.astype(wd), b2=b2,
        w3=W3.astype(wd), b3=b3,
        # Layer 4: point part stays f32 -- it runs on the VPU, not the MXU.
        w4p=W4[:, :3], w4f=W4[:, 3:], b4=b4,                 # concat([points, feats])
        w5=W5.astype(wd), b5=b5,
        w6=W6.astype(wd), b6=b6,
    )


# ----------------------------------------------------------------------------
# Pure-JAX reference, mirroring the PyTorch channels-first semantics exactly.
# ----------------------------------------------------------------------------
def reference_forward(global_feats, seeds_cf, raw, eps=1e-5):
    B, C = global_feats.shape
    F = seeds_cf.shape[1]
    feats = jnp.broadcast_to(global_feats[:, :, None], (B, C, F))

    def apply_seq(x, layers):
        for p in layers:
            y = jnp.einsum("oi,bif->bof", p["w"], x,
                           precision="highest") + p["b"][None, :, None]
            if p["gamma"] is not None:
                y = (y - p["mean"][None, :, None]) / jnp.sqrt(p["var"][None, :, None] + eps)
                y = y * p["gamma"][None, :, None] + p["beta"][None, :, None]
                y = jnp.maximum(y, 0.0)
            x = y
        return x

    seed_feats = jnp.concatenate(
        [jnp.broadcast_to(seeds_cf[None], (B, 2, F)), feats], axis=1)
    points = apply_seq(seed_feats, raw[:3])
    point_feats = jnp.concatenate([points, feats], axis=1)
    points = apply_seq(point_feats, raw[3:])
    return points


if __name__ == "__main__":
    B, input_dim, hidden_dim, steps = 2, 8, 32, 8
    grid_size = steps * steps            # F = 64 folded grid points

    key = jax.random.PRNGKey(0)
    key, kf = jax.random.split(key)
    global_feats = jax.random.normal(kf, (B, input_dim), jnp.float32)

    # generate_seeds() semantics: rows = repeat, cols = tile, shape (2, F).
    lin = jnp.linspace(-1.0, 1.0, steps, dtype=jnp.float32)
    seeds_cf = jnp.stack([jnp.repeat(lin, steps), jnp.tile(lin, steps)], axis=0)

    raw = make_raw_params(key, input_dim, hidden_dim)
    ref = reference_forward(global_feats, seeds_cf, raw)

    # f32 weight path: exact check against the PyTorch-semantics reference.
    params = build_kernel_params(raw, weight_dtype=jnp.float32)
    out = jax.block_until_ready(foldingnet_forward(global_feats, seeds_cf, params))
    assert out.shape == (B, 3, grid_size)
    np.testing.assert_allclose(np.asarray(out), np.asarray(ref), rtol=1e-4, atol=1e-4)

    # bf16 MXU-weight path (v6e/v7x): loose-tolerance accuracy check so a
    # layout/cast bug cannot hide behind a finiteness-only check.
    params_bf16 = build_kernel_params(raw, weight_dtype=jnp.bfloat16)
    out_bf16 = jax.block_until_ready(
        foldingnet_forward(global_feats, seeds_cf, params_bf16))
    assert out_bf16.shape == (B, 3, grid_size)
    np.testing.assert_allclose(np.asarray(out_bf16), np.asarray(ref),
                               rtol=5e-2, atol=1e-1)

    print("KERNEL_OK")
</pallas_src>

<mosaic_0001>
module attributes {stable_mosaic.version = 11 : i64} {
  func.func @foldingnet_kernel(%arg0: i32, %arg1: i32, %arg2: memref<32x256xf32, #tpu.memory_space<vmem>>, %arg3: memref<1x32x1xf32, #tpu.memory_space<vmem>>, %arg4: memref<1x32x1xf32, #tpu.memory_space<vmem>>, %arg5: memref<16x32xf32, #tpu.memory_space<vmem>>, %arg6: memref<16x1xf32, #tpu.memory_space<vmem>>, %arg7: memref<3x16xf32, #tpu.memory_space<vmem>>, %arg8: memref<3x1xf32, #tpu.memory_space<vmem>>, %arg9: memref<32x3xf32, #tpu.memory_space<vmem>>, %arg10: memref<16x32xf32, #tpu.memory_space<vmem>>, %arg11: memref<16x1xf32, #tpu.memory_space<vmem>>, %arg12: memref<3x16xf32, #tpu.memory_space<vmem>>, %arg13: memref<3x1xf32, #tpu.memory_space<vmem>>, %arg14: memref<1x3x256xf32, #tpu.memory_space<vmem>>) attributes {dimension_semantics = [#tpu.dimension_semantics<parallel>, #tpu.dimension_semantics<parallel>], iteration_bounds = array<i64: 1, 2>, scalar_prefetch = 0 : i64, scratch_operands = 0 : i64, tpu.core_type = #tpu.core_type<tc>, window_params = [{transform_indices = @transform_0, window_bounds = array<i64: 32, 256>}, {transform_indices = @transform_1, window_bounds = array<i64: 1, 32, 1>}, {transform_indices = @transform_2, window_bounds = array<i64: 1, 32, 1>}, {pipeline_mode = #tpu.pipeline_mode<synchronous>, transform_indices = @transform_3, window_bounds = array<i64: 16, 32>}, {pipeline_mode = #tpu.pipeline_mode<synchronous>, transform_indices = @transform_4, window_bounds = array<i64: 16, 1>}, {pipeline_mode = #tpu.pipeline_mode<synchronous>, transform_indices = @transform_5, window_bounds = array<i64: 3, 16>}, {pipeline_mode = #tpu.pipeline_mode<synchronous>, transform_indices = @transform_6, window_bounds = array<i64: 3, 1>}, {pipeline_mode = #tpu.pipeline_mode<synchronous>, transform_indices = @transform_7, window_bounds = array<i64: 32, 3>}, {pipeline_mode = #tpu.pipeline_mode<synchronous>, transform_indices = @transform_8, window_bounds = array<i64: 16, 32>}, {pipeline_mode = #tpu.pipeline_mode<synchronous>, transform_indices = @transform_9, window_bounds = array<i64: 16, 1>}, {pipeline_mode = #tpu.pipeline_mode<synchronous>, transform_indices = @transform_10, window_bounds = array<i64: 3, 16>}, {pipeline_mode = #tpu.pipeline_mode<synchronous>, transform_indices = @transform_11, window_bounds = array<i64: 3, 1>}, {transform_indices = @transform_12, window_bounds = array<i64: 1, 3, 256>}]} {
    %c0 = arith.constant 0 : index
    %c0_0 = arith.constant 0 : index
    %0 = vector.load %arg2[%c0, %c0_0] : memref<32x256xf32, #tpu.memory_space<vmem>>, vector<32x256xf32>
    %c0_1 = arith.constant 0 : index
    %c0_2 = arith.constant 0 : index
    %c0_3 = arith.constant 0 : index
    %1 = vector.load %arg3[%c0_1, %c0_2, %c0_3] : memref<1x32x1xf32, #tpu.memory_space<vmem>>, vector<1x32x1xf32>
    %2 = vector.shape_cast %1 : vector<1x32x1xf32> to vector<32x1xf32>
    %3 = vector.broadcast %2 : vector<32x1xf32> to vector<32x256xf32>
    %4 = arith.addf %0, %3 : vector<32x256xf32>
    %cst = arith.constant 0.000000e+00 : f32
    %5 = vector.broadcast %cst : f32 to vector<32x256xf32>
    %6 = arith.maximumf %4, %5 : vector<32x256xf32>
    %c0_4 = arith.constant 0 : index
    %c0_5 = arith.constant 0 : index
    %7 = vector.load %arg5[%c0_4, %c0_5] : memref<16x32xf32, #tpu.memory_space<vmem>>, vector<16x32xf32>
    %cst_6 = arith.constant dense<0.000000e+00> : vector<16x256xf32>
    %8 = tpu.matmul %7, %6, %cst_6 {dimension_numbers = #tpu.dot_dimension_numbers<[1], [0], [0], [1], [0, 0, 1, 1], [], []>} : vector<16x32xf32>, vector<32x256xf32>, vector<16x256xf32> -> vector<16x256xf32>
    %c0_7 = arith.constant 0 : index
    %c0_8 = arith.constant 0 : index
    %9 = vector.load %arg6[%c0_7, %c0_8] : memref<16x1xf32, #tpu.memory_space<vmem>>, vector<16x1xf32>
    %10 = vector.broadcast %9 : vector<16x1xf32> to vector<16x256xf32>
    %11 = arith.addf %8, %10 : vector<16x256xf32>
    %cst_9 = arith.constant 0.000000e+00 : f32
    %12 = vector.broadcast %cst_9 : f32 to vector<16x256xf32>
    %13 = arith.maximumf %11, %12 : vector<16x256xf32>
    %c0_10 = arith.constant 0 : index
    %c0_11 = arith.constant 0 : index
    %14 = vector.load %arg7[%c0_10, %c0_11] : memref<3x16xf32, #tpu.memory_space<vmem>>, vector<3x16xf32>
    %cst_12 = arith.constant dense<0.000000e+00> : vector<3x256xf32>
    %15 = tpu.matmul %14, %13, %cst_12 {dimension_numbers = #tpu.dot_dimension_numbers<[1], [0], [0], [1], [0, 0, 1, 1], [], []>} : vector<3x16xf32>, vector<16x256xf32>, vector<3x256xf32> -> vector<3x256xf32>
    %c0_13 = arith.constant 0 : index
    %c0_14 = arith.constant 0 : index
    %16 = vector.load %arg8[%c0_13, %c0_14] : memref<3x1xf32, #tpu.memory_space<vmem>>, vector<3x1xf32>
    %17 = vector.broadcast %16 : vector<3x1xf32> to vector<3x256xf32>
    %18 = arith.addf %15, %17 : vector<3x256xf32>
    %c0_15 = arith.constant 0 : index
    %c0_16 = arith.constant 0 : index
    %19 = vector.load %arg9[%c0_15, %c0_16] : memref<32x3xf32, #tpu.memory_space<vmem>>, vector<32x3xf32>
    %20 = vector.extract_strided_slice %19 {offsets = [0, 0], sizes = [32, 1], strides = [1, 1]} : vector<32x3xf32> to vector<32x1xf32>
    %21 = vector.extract_strided_slice %18 {offsets = [0, 0], sizes = [1, 256], strides = [1, 1]} : vector<3x256xf32> to vector<1x256xf32>
    %22 = vector.broadcast %20 : vector<32x1xf32> to vector<32x256xf32>
    %23 = vector.broadcast %21 : vector<1x256xf32> to vector<32x256xf32>
    %24 = arith.mulf %22, %23 : vector<32x256xf32>
    %25 = vector.extract_strided_slice %19 {offsets = [0, 1], sizes = [32, 1], strides = [1, 1]} : vector<32x3xf32> to vector<32x1xf32>
    %26 = vector.extract_strided_slice %18 {offsets = [1, 0], sizes = [1, 256], strides = [1, 1]} : vector<3x256xf32> to vector<1x256xf32>
    %27 = vector.broadcast %25 : vector<32x1xf32> to vector<32x256xf32>
    %28 = vector.broadcast %26 : vector<1x256xf32> to vector<32x256xf32>
    %29 = arith.mulf %27, %28 : vector<32x256xf32>
    %30 = arith.addf %24, %29 : vector<32x256xf32>
    %31 = vector.extract_strided_slice %19 {offsets = [0, 2], sizes = [32, 1], strides = [1, 1]} : vector<32x3xf32> to vector<32x1xf32>
    %32 = vector.extract_strided_slice %18 {offsets = [2, 0], sizes = [1, 256], strides = [1, 1]} : vector<3x256xf32> to vector<1x256xf32>
    %33 = vector.broadcast %31 : vector<32x1xf32> to vector<32x256xf32>
    %34 = vector.broadcast %32 : vector<1x256xf32> to vector<32x256xf32>
    %35 = arith.mulf %33, %34 : vector<32x256xf32>
    %36 = arith.addf %30, %35 : vector<32x256xf32>
    %c0_17 = arith.constant 0 : index
    %c0_18 = arith.constant 0 : index
    %c0_19 = arith.constant 0 : index
    %37 = vector.load %arg4[%c0_17, %c0_18, %c0_19] : memref<1x32x1xf32, #tpu.memory_space<vmem>>, vector<1x32x1xf32>
    %38 = vector.shape_cast %37 : vector<1x32x1xf32> to vector<32x1xf32>
    %39 = vector.broadcast %38 : vector<32x1xf32> to vector<32x256xf32>
    %40 = arith.addf %36, %39 : vector<32x256xf32>
    %cst_20 = arith.constant 0.000000e+00 : f32
    %41 = vector.broadcast %cst_20 : f32 to vector<32x256xf32>
    %42 = arith.maximumf %40, %41 : vector<32x256xf32>
    %c0_21 = arith.constant 0 : index
    %c0_22 = arith.constant 0 : index
    %43 = vector.load %arg10[%c0_21, %c0_22] : memref<16x32xf32, #tpu.memory_space<vmem>>, vector<16x32xf32>
    %cst_23 = arith.constant dense<0.000000e+00> : vector<16x256xf32>
    %44 = tpu.matmul %43, %42, %cst_23 {dimension_numbers = #tpu.dot_dimension_numbers<[1], [0], [0], [1], [0, 0, 1, 1], [], []>} : vector<16x32xf32>, vector<32x256xf32>, vector<16x256xf32> -> vector<16x256xf32>
    %c0_24 = arith.constant 0 : index
    %c0_25 = arith.constant 0 : index
    %45 = vector.load %arg11[%c0_24, %c0_25] : memref<16x1xf32, #tpu.memory_space<vmem>>, vector<16x1xf32>
    %46 = vector.broadcast %45 : vector<16x1xf32> to vector<16x256xf32>
    %47 = arith.addf %44, %46 : vector<16x256xf32>
    %cst_26 = arith.constant 0.000000e+00 : f32
    %48 = vector.broadcast %cst_26 : f32 to vector<16x256xf32>
    %49 = arith.maximumf %47, %48 : vector<16x256xf32>
    %c0_27 = arith.constant 0 : index
    %c0_28 = arith.constant 0 : index
    %50 = vector.load %arg12[%c0_27, %c0_28] : memref<3x16xf32, #tpu.memory_space<vmem>>, vector<3x16xf32>
    %cst_29 = arith.constant dense<0.000000e+00> : vector<3x256xf32>
    %51 = tpu.matmul %50, %49, %cst_29 {dimension_numbers = #tpu.dot_dimension_numbers<[1], [0], [0], [1], [0, 0, 1, 1], [], []>} : vector<3x16xf32>, vector<16x256xf32>, vector<3x256xf32> -> vector<3x256xf32>
    %c0_30 = arith.constant 0 : index
    %c0_31 = arith.constant 0 : index
    %52 = vector.load %arg13[%c0_30, %c0_31] : memref<3x1xf32, #tpu.memory_space<vmem>>, vector<3x1xf32>
    %53 = vector.broadcast %52 : vector<3x1xf32> to vector<3x256xf32>
    %54 = arith.addf %51, %53 : vector<3x256xf32>
    %c0_32 = arith.constant 0 : index
    %c0_33 = arith.constant 0 : index
    %c0_34 = arith.constant 0 : index
    %55 = vector.load %arg14[%c0_32, %c0_33, %c0_34] : memref<1x3x256xf32, #tpu.memory_space<vmem>>, vector<1x3x256xf32>
    %56 = vector.shape_cast %55 : vector<1x3x256xf32> to vector<3x256xf32>
    %57 = vector.shape_cast %54 : vector<3x256xf32> to vector<1x3x256xf32>
    tpu.vector_store %arg14[%c0_32, %c0_33, %c0_34], %57 {strides = array<i32>} : memref<1x3x256xf32, #tpu.memory_space<vmem>>, vector<1x3x256xf32>,
    return
  }
  func.func @transform_0(%arg0: i32, %arg1: i32) -> (i32, i32) {
    %c0_i32 = arith.constant 0 : i32
    %c0_i32_0 = arith.constant 0 : i32
    return %c0_i32, %arg0 : i32, i32
  }
  func.func @transform_1(%arg0: i32, %arg1: i32) -> (i32, i32, i32) {
    %c0_i32 = arith.constant 0 : i32
    %c0_i32_0 = arith.constant 0 : i32
    %c0_i32_1 = arith.constant 0 : i32
    return %arg1, %c0_i32, %c0_i32_0 : i32, i32, i32
  }
  func.func @transform_2(%arg0: i32, %arg1: i32) -> (i32, i32, i32) {
    %c0_i32 = arith.constant 0 : i32
    %c0_i32_0 = arith.constant 0 : i32
    %c0_i32_1 = arith.constant 0 : i32
    return %arg1, %c0_i32, %c0_i32_0 : i32, i32, i32
  }
  func.func @transform_3(%arg0: i32, %arg1: i32) -> (i32, i32) {
    %c0_i32 = arith.constant 0 : i32
    %c0_i32_0 = arith.constant 0 : i32
    %c0_i32_1 = arith.constant 0 : i32
    return %c0_i32, %c0_i32_0 : i32, i32
  }
  func.func @transform_4(%arg0: i32, %arg1: i32) -> (i32, i32) {
    %c0_i32 = arith.constant 0 : i32
    %c0_i32_0 = arith.constant 0 : i32
    %c0_i32_1 = arith.constant 0 : i32
    return %c0_i32, %c0_i32_0 : i32, i32
  }
  func.func @transform_5(%arg0: i32, %arg1: i32) -> (i32, i32) {
    %c0_i32 = arith.constant 0 : i32
    %c0_i32_0 = arith.constant 0 : i32
    %c0_i32_1 = arith.constant 0 : i32
    return %c0_i32, %c0_i32_0 : i32, i32
  }
  func.func @transform_6(%arg0: i32, %arg1: i32) -> (i32, i32) {
    %c0_i32 = arith.constant 0 : i32
    %c0_i32_0 = arith.constant 0 : i32
    %c0_i32_1 = arith.constant 0 : i32
    return %c0_i32, %c0_i32_0 : i32, i32
  }
  func.func @transform_7(%arg0: i32, %arg1: i32) -> (i32, i32) {
    %c0_i32 = arith.constant 0 : i32
    %c0_i32_0 = arith.constant 0 : i32
    %c0_i32_1 = arith.constant 0 : i32
    return %c0_i32, %c0_i32_0 : i32, i32
  }
  func.func @transform_8(%arg0: i32, %arg1: i32) -> (i32, i32) {
    %c0_i32 = arith.constant 0 : i32
    %c0_i32_0 = arith.constant 0 : i32
    %c0_i32_1 = arith.constant 0 : i32
    return %c0_i32, %c0_i32_0 : i32, i32
  }
  func.func @transform_9(%arg0: i32, %arg1: i32) -> (i32, i32) {
    %c0_i32 = arith.constant 0 : i32
    %c0_i32_0 = arith.constant 0 : i32
    %c0_i32_1 = arith.constant 0 : i32
    return %c0_i32, %c0_i32_0 : i32, i32
  }
  func.func @transform_10(%arg0: i32, %arg1: i32) -> (i32, i32) {
    %c0_i32 = arith.constant 0 : i32
    %c0_i32_0 = arith.constant 0 : i32
    %c0_i32_1 = arith.constant 0 : i32
    return %c0_i32, %c0_i32_0 : i32, i32
  }
  func.func @transform_11(%arg0: i32, %arg1: i32) -> (i32, i32) {
    %c0_i32 = arith.constant 0 : i32
    %c0_i32_0 = arith.constant 0 : i32
    %c0_i32_1 = arith.constant 0 : i32
    return %c0_i32, %c0_i32_0 : i32, i32
  }
  func.func @transform_12(%arg0: i32, %arg1: i32) -> (i32, i32, i32) {
    %c0_i32 = arith.constant 0 : i32
    %c0_i32_0 = arith.constant 0 : i32
    return %arg1, %c0_i32, %arg0 : i32, i32, i32
  }
}

</mosaic_0001>

<llo_original>
// kernel: tpu_custom_call.1
$region0: #{tpu_custom_call.1}
  #allocation0 [shape = 'u32[]', space=smem, size = 0x4, offset = 0x4, fixed_abs, tag = 'smem constant byte address 0x4 - core index']
  #allocation1 [shape = 'u32[72,128]{1,0:T(1,128)}', space=vmem, size = 0x9000, scoped, tag = 'internal scratch']
  %s0 = inlined_call_operand.vmem [shape: f32[32,256], index: 0, kind: input, shape index: {}]
  %s1 = inlined_call_operand.vmem [shape: f32[2,32,1], index: 1, kind: input, shape index: {}]
  %s2 = inlined_call_operand.vmem [shape: f32[2,32,1], index: 2, kind: input, shape index: {}]
  %s3 = inlined_call_operand.vmem [shape: f32[16,32], index: 3, kind: input, shape index: {}]
  %s4 = inlined_call_operand.vmem [shape: f32[16,1], index: 4, kind: input, shape index: {}]
  %s5 = inlined_call_operand.vmem [shape: f32[3,16], index: 5, kind: input, shape index: {}]
  %s6 = inlined_call_operand.vmem [shape: f32[3,1], index: 6, kind: input, shape index: {}]
  %s7 = inlined_call_operand.vmem [shape: f32[32,3], index: 7, kind: input, shape index: {}]
  %s8 = inlined_call_operand.vmem [shape: f32[16,32], index: 8, kind: input, shape index: {}]
  %s9 = inlined_call_operand.vmem [shape: f32[16,1], index: 9, kind: input, shape index: {}]
  %s10 = inlined_call_operand.vmem [shape: f32[3,16], index: 10, kind: input, shape index: {}]
  %s11 = inlined_call_operand.vmem [shape: f32[3,1], index: 11, kind: input, shape index: {}]
  %s12 = inlined_call_operand.vmem [shape: f32[2,3,256], index: 12, kind: output, shape index: {}]
  %s13 = sld [smem:[#allocation0]]
  $region81: #{tpu_custom_call.1} parent=0
    _
  %s15 = ssub.s32 1, %s13
  %s16 = scalar_select 0, %s15, %s13
  loop: start=0, step=1, limit=4
  $region2: #{tpu_custom_call.1} parent=0 // loop_pre_header
    _
  $region3: #{tpu_custom_call.1} parent=0 // loop_header
    %s18 = sphi 0, %s22
    %p19 = scmp.ge.s32.totalorder %s18, 4
    %s25 = sphi 0, %s37
    %s26 = sphi 0, %s33
    %s27 = sphi 0, %s25
    %s28 = sphi 0, %s26
    %s29 = sphi 0, %s27
    %s30 = sphi 0, %s28
    %s40 = sphi 0, %s42
    %s43 = sphi 0, %s40
    %s44 = sphi 0, %s43
    %s60 = sphi 0, %s44
    %s66 = sphi 0, %s68
    %s69 = sphi 0, %s66
    %s70 = sphi 0, %s69
    %s86 = sphi 0, %s70
    %s92 = sphi 0, %s94
    %s95 = sphi 0, %s92
    %s96 = sphi 0, %s95
    %s112 = sphi 0, %s96
    %s116 = sphi 0, %s116
    %s118 = sphi 0, %s116
    %s119 = sphi 0, %s118
    %s133 = sphi 0, %s119
    %s137 = sphi 0, %s137
    %s139 = sphi 0, %s137
    %s140 = sphi 0, %s139
    %s154 = sphi 0, %s140
    %s158 = sphi 0, %s158
    %s160 = sphi 0, %s158
    %s161 = sphi 0, %s160
    %s175 = sphi 0, %s161
    %s179 = sphi 0, %s179
    %s181 = sphi 0, %s179
    %s182 = sphi 0, %s181
    %s196 = sphi 0, %s182
    %s200 = sphi 0, %s200
    %s202 = sphi 0, %s200
    %s203 = sphi 0, %s202
    %s217 = sphi 0, %s203
    %s221 = sphi 0, %s221
    %s223 = sphi 0, %s221
    %s224 = sphi 0, %s223
    %s238 = sphi 0, %s224
    %s242 = sphi 0, %s242
    %s244 = sphi 0, %s242
    %s245 = sphi 0, %s244
    %s259 = sphi 0, %s245
    %s263 = sphi 0, %s263
    %s265 = sphi 0, %s263
    %s266 = sphi 0, %s265
    %s280 = sphi 0, %s266
    %s284 = sphi 0, %s284
    %s286 = sphi 0, %s284
    %s287 = sphi 0, %s286
    %s301 = sphi 0, %s287
    %s309 = sphi 0, %s311
    %s312 = sphi 0, %s309
    %s313 = sphi 0, %s312
    %s329 = sphi 0, %s313
  $region4: #{tpu_custom_call.1} parent=0 // loop_header_branch
    %21 = sbr.rel (%p19) target = $region8
  $region5: #{tpu_custom_call.1} parent=0 // loop_body
    %s23 = ssub.s32 %s18, 1
    %s24 = ssub.s32 %s18, 2
    %s31 = sadd.s32 1, %s26
    %p32 = scmp.ge.s32.totalorder %s31, 2
    %s33 = scalar_select %p32, 0, %s31
    %s34 = sadd.s32 1, %s25
    %s35 = scalar_select %p32, %s34, %s25
    %p36 = scmp.ge.s32.totalorder %s35, 1
    %s37 = scalar_select %p36, 0, %s35
    %s38 = ssub.s32 %s25, %s37
    %p39 = scmp.eq.s32.totalorder %s38, 0
    %s41 = sadd.s32 %s40, 1
    %s42 = scalar_select %p39, %s40, %s41
    %p45 = pneg %p39
    %p46 = scmp.eq.s32.totalorder %s18, 1
    %p47 = por %p45, %p46
    %p48 = scmp.ne.s32.totalorder %s40, %s43
    %p49 = scmp.eq.s32.totalorder %s18, 0
    %p50 = por %p48, %p49
    %p51 = scmp.ne.s32.totalorder %s40, %s43
    %p52 = scmp.eq.s32.totalorder %s23, 1
    %p53 = por %p51, %p52
    %p54 = scmp.ne.s32.totalorder %s43, %s44
    %p55 = scmp.eq.s32.totalorder %s23, 0
    %p56 = por %p54, %p55
    %p57 = scmp.ne.s32.totalorder %s43, %s44
    %p58 = scmp.eq.s32.totalorder %s24, 1
    %p59 = por %p57, %p58
    %p61 = scmp.ne.s32.totalorder %s44, %s60
    %p62 = scmp.eq.s32.totalorder %s24, 0
    %p63 = por %p61, %p62
    %s64 = ssub.s32 %s26, %s33
    %p65 = scmp.eq.s32.totalorder %s64, 0
    %s67 = sadd.s32 %s66, 1
    %s68 = scalar_select %p65, %s66, %s67
    %p71 = pneg %p65
    %p72 = scmp.eq.s32.totalorder %s18, 1
    %p73 = por %p71, %p72
    %p74 = scmp.ne.s32.totalorder %s66, %s69
    %p75 = scmp.eq.s32.totalorder %s18, 0
    %p76 = por %p74, %p75
    %p77 = scmp.ne.s32.totalorder %s66, %s69
    %p78 = scmp.eq.s32.totalorder %s23, 1
    %p79 = por %p77, %p78
    %p80 = scmp.ne.s32.totalorder %s69, %s70
    %p81 = scmp.eq.s32.totalorder %s23, 0
    %p82 = por %p80, %p81
    %p83 = scmp.ne.s32.totalorder %s69, %s70
    %p84 = scmp.eq.s32.totalorder %s24, 1
    %p85 = por %p83, %p84
    %p87 = scmp.ne.s32.totalorder %s70, %s86
    %p88 = scmp.eq.s32.totalorder %s24, 0
    %p89 = por %p87, %p88
    %s90 = ssub.s32 %s26, %s33
    %p91 = scmp.eq.s32.totalorder %s90, 0
    %s93 = sadd.s32 %s92, 1
    %s94 = scalar_select %p91, %s92, %s93
    %p97 = pneg %p91
    %p98 = scmp.eq.s32.totalorder %s18, 1
    %p99 = por %p97, %p98
    %p100 = scmp.ne.s32.totalorder %s92, %s95
    %p101 = scmp.eq.s32.totalorder %s18, 0
    %p102 = por %p100, %p101
    %p103 = scmp.ne.s32.totalorder %s92, %s95
    %p104 = scmp.eq.s32.totalorder %s23, 1
    %p105 = por %p103, %p104
    %p106 = scmp.ne.s32.totalorder %s95, %s96
    %p107 = scmp.eq.s32.totalorder %s23, 0
    %p108 = por %p106, %p107
    %p109 = scmp.ne.s32.totalorder %s95, %s96
    %p110 = scmp.eq.s32.totalorder %s24, 1
    %p111 = por %p109, %p110
    %p113 = scmp.ne.s32.totalorder %s96, %s112
    %p114 = scmp.eq.s32.totalorder %s24, 0
    %p115 = por %p113, %p114
    %s117 = sadd.s32 %s116, 1
    %p120 = scmp.eq.s32.totalorder %s18, 1
    %p121 = scmp.ne.s32.totalorder %s116, %s118
    %p122 = scmp.eq.s32.totalorder %s18, 0
    %p123 = por %p121, %p122
    %p124 = scmp.ne.s32.totalorder %s116, %s118
    %p125 = scmp.eq.s32.totalorder %s23, 1
    %p126 = por %p124, %p125
    %p127 = scmp.ne.s32.totalorder %s118, %s119
    %p128 = scmp.eq.s32.totalorder %s23, 0
    %p129 = por %p127, %p128
    %p130 = scmp.ne.s32.totalorder %s118, %s119
    %p131 = scmp.eq.s32.totalorder %s24, 1
    %p132 = por %p130, %p131
    %p134 = scmp.ne.s32.totalorder %s119, %s133
    %p135 = scmp.eq.s32.totalorder %s24, 0
    %p136 = por %p134, %p135
    %s138 = sadd.s32 %s137, 1
    %p141 = scmp.eq.s32.totalorder %s18, 1
    %p142 = scmp.ne.s32.totalorder %s137, %s139
    %p143 = scmp.eq.s32.totalorder %s18, 0
    %p144 = por %p142, %p143
    %p145 = scmp.ne.s32.totalorder %s137, %s139
    %p146 = scmp.eq.s32.totalorder %s23, 1
    %p147 = por %p145, %p146
    %p148 = scmp.ne.s32.totalorder %s139, %s140
    %p149 = scmp.eq.s32.totalorder %s23, 0
    %p150 = por %p148, %p149
    %p151 = scmp.ne.s32.totalorder %s139, %s140
    %p152 = scmp.eq.s32.totalorder %s24, 1
    %p153 = por %p151, %p152
    %p155 = scmp.ne.s32.totalorder %s140, %s154
    %p156 = scmp.eq.s32.totalorder %s24, 0
    %p157 = por %p155, %p156
    %s159 = sadd.s32 %s158, 1
    %p162 = scmp.eq.s32.totalorder %s18, 1
    %p163 = scmp.ne.s32.totalorder %s158, %s160
    %p164 = scmp.eq.s32.totalorder %s18, 0
    %p165 = por %p163, %p164
    %p166 = scmp.ne.s32.totalorder %s158, %s160
    %p167 = scmp.eq.s32.totalorder %s23, 1
    %p168 = por %p166, %p167
    %p169 = scmp.ne.s32.totalorder %s160, %s161
    %p170 = scmp.eq.s32.totalorder %s23, 0
    %p171 = por %p169, %p170
    %p172 = scmp.ne.s32.totalorder %s160, %s161
    %p173 = scmp.eq.s32.totalorder %s24, 1
    %p174 = por %p172, %p173
    %p176 = scmp.ne.s32.totalorder %s161, %s175
    %p177 = scmp.eq.s32.totalorder %s24, 0
    %p178 = por %p176, %p177
    %s180 = sadd.s32 %s179, 1
    %p183 = scmp.eq.s32.totalorder %s18, 1
    %p184 = scmp.ne.s32.totalorder %s179, %s181
    %p185 = scmp.eq.s32.totalorder %s18, 0
    %p186 = por %p184, %p185
    %p187 = scmp.ne.s32.totalorder %s179, %s181
    %p188 = scmp.eq.s32.totalorder %s23, 1
    %p189 = por %p187, %p188
    %p190 = scmp.ne.s32.totalorder %s181, %s182
    %p191 = scmp.eq.s32.totalorder %s23, 0
    %p192 = por %p190, %p191
    %p193 = scmp.ne.s32.totalorder %s181, %s182
    %p194 = scmp.eq.s32.totalorder %s24, 1
    %p195 = por %p193, %p194
    %p197 = scmp.ne.s32.totalorder %s182, %s196
    %p198 = scmp.eq.s32.totalorder %s24, 0
    %p199 = por %p197, %p198
    %s201 = sadd.s32 %s200, 1
    %p204 = scmp.eq.s32.totalorder %s18, 1
    %p205 = scmp.ne.s32.totalorder %s200, %s202
    %p206 = scmp.eq.s32.totalorder %s18, 0
    %p207 = por %p205, %p206
    %p208 = scmp.ne.s32.totalorder %s200, %s202
    %p209 = scmp.eq.s32.totalorder %s23, 1
    %p210 = por %p208, %p209
    %p211 = scmp.ne.s32.totalorder %s202, %s203
    %p212 = scmp.eq.s32.totalorder %s23, 0
    %p213 = por %p211, %p212
    %p214 = scmp.ne.s32.totalorder %s202, %s203
    %p215 = scmp.eq.s32.totalorder %s24, 1
    %p216 = por %p214, %p215
    %p218 = scmp.ne.s32.totalorder %s203, %s217
    %p219 = scmp.eq.s32.totalorder %s24, 0
    %p220 = por %p218, %p219
    %s222 = sadd.s32 %s221, 1
    %p225 = scmp.eq.s32.totalorder %s18, 1
    %p226 = scmp.ne.s32.totalorder %s221, %s223
    %p227 = scmp.eq.s32.totalorder %s18, 0
    %p228 = por %p226, %p227
    %p229 = scmp.ne.s32.totalorder %s221, %s223
    %p230 = scmp.eq.s32.totalorder %s23, 1
    %p231 = por %p229, %p230
    %p232 = scmp.ne.s32.totalorder %s223, %s224
    %p233 = scmp.eq.s32.totalorder %s23, 0
    %p234 = por %p232, %p233
    %p235 = scmp.ne.s32.totalorder %s223, %s224
    %p236 = scmp.eq.s32.totalorder %s24, 1
    %p237 = por %p235, %p236
    %p239 = scmp.ne.s32.totalorder %s224, %s238
    %p240 = scmp.eq.s32.totalorder %s24, 0
    %p241 = por %p239, %p240
    %s243 = sadd.s32 %s242, 1
    %p246 = scmp.eq.s32.totalorder %s18, 1
    %p247 = scmp.ne.s32.totalorder %s242, %s244
    %p248 = scmp.eq.s32.totalorder %s18, 0
    %p249 = por %p247, %p248
    %p250 = scmp.ne.s32.totalorder %s242, %s244
    %p251 = scmp.eq.s32.totalorder %s23, 1
    %p252 = por %p250, %p251
    %p253 = scmp.ne.s32.totalorder %s244, %s245
    %p254 = scmp.eq.s32.totalorder %s23, 0
    %p255 = por %p253, %p254
    %p256 = scmp.ne.s32.totalorder %s244, %s245
    %p257 = scmp.eq.s32.totalorder %s24, 1
    %p258 = por %p256, %p257
    %p260 = scmp.ne.s32.totalorder %s245, %s259
    %p261 = scmp.eq.s32.totalorder %s24, 0
    %p262 = por %p260, %p261
    %s264 = sadd.s32 %s263, 1
    %p267 = scmp.eq.s32.totalorder %s18, 1
    %p268 = scmp.ne.s32.totalorder %s263, %s265
    %p269 = scmp.eq.s32.totalorder %s18, 0
    %p270 = por %p268, %p269
    %p271 = scmp.ne.s32.totalorder %s263, %s265
    %p272 = scmp.eq.s32.totalorder %s23, 1
    %p273 = por %p271, %p272
    %p274 = scmp.ne.s32.totalorder %s265, %s266
    %p275 = scmp.eq.s32.totalorder %s23, 0
    %p276 = por %p274, %p275
    %p277 = scmp.ne.s32.totalorder %s265, %s266
    %p278 = scmp.eq.s32.totalorder %s24, 1
    %p279 = por %p277, %p278
    %p281 = scmp.ne.s32.totalorder %s266, %s280
    %p282 = scmp.eq.s32.totalorder %s24, 0
    %p283 = por %p281, %p282
    %s285 = sadd.s32 %s284, 1
    %p288 = scmp.eq.s32.totalorder %s18, 1
    %p289 = scmp.ne.s32.totalorder %s284, %s286
    %p290 = scmp.eq.s32.totalorder %s18, 0
    %p291 = por %p289, %p290
    %p292 = scmp.ne.s32.totalorder %s284, %s286
    %p293 = scmp.eq.s32.totalorder %s23, 1
    %p294 = por %p292, %p293
    %p295 = scmp.ne.s32.totalorder %s286, %s287
    %p296 = scmp.eq.s32.totalorder %s23, 0
    %p297 = por %p295, %p296
    %p298 = scmp.ne.s32.totalorder %s286, %s287
    %p299 = scmp.eq.s32.totalorder %s24, 1
    %p300 = por %p298, %p299
    %p302 = scmp.ne.s32.totalorder %s287, %s301
    %p303 = scmp.eq.s32.totalorder %s24, 0
    %p304 = por %p302, %p303
    %s305 = ssub.s32 %s26, %s33
    %s306 = ssub.s32 %s25, %s37
    %s307 = sor.u32 %s305, %s306
    %p308 = scmp.eq.s32.totalorder %s307, 0
    %s310 = sadd.s32 %s309, 1
    %s311 = scalar_select %p308, %s309, %s310
    %p314 = pneg %p308
    %p315 = scmp.eq.s32.totalorder %s18, 1
    %p316 = por %p314, %p315
    %p317 = scmp.ne.s32.totalorder %s309, %s312
    %p318 = scmp.eq.s32.totalorder %s18, 0
    %p319 = por %p317, %p318
    %p320 = scmp.ne.s32.totalorder %s309, %s312
    %p321 = scmp.eq.s32.totalorder %s23, 1
    %p322 = por %p320, %p321
    %p323 = scmp.ne.s32.totalorder %s312, %s313
    %p324 = scmp.eq.s32.totalorder %s23, 0
    %p325 = por %p323, %p324
    %p326 = scmp.ne.s32.totalorder %s312, %s313
    %p327 = scmp.eq.s32.totalorder %s24, 1
    %p328 = por %p326, %p327
    %p330 = scmp.ne.s32.totalorder %s313, %s329
    %p331 = scmp.eq.s32.totalorder %s24, 0
    %p332 = por %p330, %p331
    %p333 = scmp.le.s32.totalorder 1, %s18
    %p334 = scmp.lt.s32.totalorder %s18, 3
    %p335 = pnand %p333, %p334
    %p336 = pneg %p335
    // Predicated region
    $region9: #{tpu_custom_call.1} parent=5 // pred_check
      _
    $region10: #{tpu_custom_call.1} parent=5 // pred_check_branch
      %338 = sbr.rel (%p335) target = $region12
    $region11: #{tpu_custom_call.1} parent=5 // pred_region
      %s339 = ssub.s32 %s18, 1
      // Predicated region
      $region13: #{tpu_custom_call.1} parent=11 // pred_check
        %p340 = pneg %p56
      $region14: #{tpu_custom_call.1} parent=11 // pred_check_branch
        %342 = sbr.rel (%p340) target = $region16
      $region15: #{tpu_custom_call.1} parent=11 // pred_region
        %s343 = smul.u32 2, %s27
        %p344 = scmp.lt.s32.totalorder %s343, 1
        %s345 = scalar_select %p344, %s343, 1
        %s346 = smul.addr %s345, 8
        %s347 = scalar_lea.vmem %s0, %s346
        %s348 = smul.u32 2, %s27
      $region16: #{tpu_custom_call.1} parent=11 // pred_fallthru
        _
      // Predicated region
      $region17: #{tpu_custom_call.1} parent=11 // pred_check
        %p349 = pneg %p129
      $region18: #{tpu_custom_call.1} parent=11 // pred_check_branch
        %351 = sbr.rel (%p349) target = $region20
      $region19: #{tpu_custom_call.1} parent=11 // pred_region
        _
      $region20: #{tpu_custom_call.1} parent=11 // pred_fallthru
        _
      // Predicated region
      $region21: #{tpu_custom_call.1} parent=11 // pred_check
        %p352 = pneg %p150
      $region22: #{tpu_custom_call.1} parent=11 // pred_check_branch
        %354 = sbr.rel (%p352) target = $region24
      $region23: #{tpu_custom_call.1} parent=11 // pred_region
        _
      $region24: #{tpu_custom_call.1} parent=11 // pred_fallthru
        _
      // Predicated region
      $region25: #{tpu_custom_call.1} parent=11 // pred_check
        %p355 = pneg %p171
      $region26: #{tpu_custom_call.1} parent=11 // pred_check_branch
        %357 = sbr.rel (%p355) target = $region28
      $region27: #{tpu_custom_call.1} parent=11 // pred_region
        _
      $region28: #{tpu_custom_call.1} parent=11 // pred_fallthru
        _
      // Predicated region
      $region29: #{tpu_custom_call.1} parent=11 // pred_check
        %p358 = pneg %p192
      $region30: #{tpu_custom_call.1} parent=11 // pred_check_branch
        %360 = sbr.rel (%p358) target = $region32
      $region31: #{tpu_custom_call.1} parent=11 // pred_region
        _
      $region32: #{tpu_custom_call.1} parent=11 // pred_fallthru
        _
      // Predicated region
      $region33: #{tpu_custom_call.1} parent=11 // pred_check
        %p361 = pneg %p213
      $region34: #{tpu_custom_call.1} parent=11 // pred_check_branch
        %363 = sbr.rel (%p361) target = $region36
      $region35: #{tpu_custom_call.1} parent=11 // pred_region
        _
      $region36: #{tpu_custom_call.1} parent=11 // pred_fallthru
        _
      // Predicated region
      $region37: #{tpu_custom_call.1} parent=11 // pred_check
        %p364 = pneg %p234
      $region38: #{tpu_custom_call.1} parent=11 // pred_check_branch
        %366 = sbr.rel (%p364) target = $region40
      $region39: #{tpu_custom_call.1} parent=11 // pred_region
        _
      $region40: #{tpu_custom_call.1} parent=11 // pred_fallthru
        _
      // Predicated region
      $region41: #{tpu_custom_call.1} parent=11 // pred_check
        %p367 = pneg %p255
      $region42: #{tpu_custom_call.1} parent=11 // pred_check_branch
        %369 = sbr.rel (%p367) target = $region44
      $region43: #{tpu_custom_call.1} parent=11 // pred_region
        _
      $region44: #{tpu_custom_call.1} parent=11 // pred_fallthru
        _
      // Predicated region
      $region45: #{tpu_custom_call.1} parent=11 // pred_check
        %p370 = pneg %p276
      $region46: #{tpu_custom_call.1} parent=11 // pred_check_branch
        %372 = sbr.rel (%p370) target = $region48
      $region47: #{tpu_custom_call.1} parent=11 // pred_region
        _
      $region48: #{tpu_custom_call.1} parent=11 // pred_fallthru
        _
      // Predicated region
      $region49: #{tpu_custom_call.1} parent=11 // pred_check
        %p373 = pneg %p297
      $region50: #{tpu_custom_call.1} parent=11 // pred_check_branch
        %375 = sbr.rel (%p373) target = $region52
      $region51: #{tpu_custom_call.1} parent=11 // pred_region
        _
      $region52: #{tpu_custom_call.1} parent=11 // pred_fallthru
        _
    $region12: #{tpu_custom_call.1} parent=5 // pred_fallthru
      _
    %p376 = scmp.lt.s32.totalorder %s18, 2
    // Predicated region
    $region53: #{tpu_custom_call.1} parent=5 // pred_check
      %p377 = pneg %p376
    $region54: #{tpu_custom_call.1} parent=5 // pred_check_branch
      %379 = sbr.rel (%p377) target = $region56
    $region55: #{tpu_custom_call.1} parent=5 // pred_region
      // Predicated region
      $region57: #{tpu_custom_call.1} parent=55 // pred_check
        %p380 = pneg %p76
      $region58: #{tpu_custom_call.1} parent=55 // pred_check_branch
        %382 = sbr.rel (%p380) target = $region60
      $region59: #{tpu_custom_call.1} parent=55 // pred_region
        %p383 = scmp.lt.s32.totalorder %s26, 1
        %s384 = scalar_select %p383, %s26, 1
        %s385 = smul.addr %s384, 4
        %s386 = smul.addr %s385, 8
        %s387 = scalar_lea.vmem %s1, %s386
      $region60: #{tpu_custom_call.1} parent=55 // pred_fallthru
        _
      // Predicated region
      $region61: #{tpu_custom_call.1} parent=55 // pred_check
        %p388 = pneg %p102
      $region62: #{tpu_custom_call.1} parent=55 // pred_check_branch
        %390 = sbr.rel (%p388) target = $region64
      $region63: #{tpu_custom_call.1} parent=55 // pred_region
        %p391 = scmp.lt.s32.totalorder %s26, 1
        %s392 = scalar_select %p391, %s26, 1
        %s393 = smul.addr %s392, 4
        %s394 = smul.addr %s393, 8
        %s395 = scalar_lea.vmem %s2, %s394
      $region64: #{tpu_custom_call.1} parent=55 // pred_fallthru
        _
    $region56: #{tpu_custom_call.1} parent=5 // pred_fallthru
      _
    %p396 = scmp.le.s32.totalorder 1, %s18
    %p397 = scmp.lt.s32.totalorder %s18, 3
    %p398 = pnand %p396, %p397
    %p399 = pneg %p398
    // Predicated region
    $region65: #{tpu_custom_call.1} parent=5 // pred_check
      _
    $region66: #{tpu_custom_call.1} parent=5 // pred_check_branch
      %401 = sbr.rel (%p398) target = $region68
    $region67: #{tpu_custom_call.1} parent=5 // pred_region
      %s402 = ssub.s32 %s18, 1
      %s403 = smul.u32 2, %s27
      %p404 = scmp.lt.s32.totalorder %s403, 1
      %s405 = scalar_select %p404, %s403, 1
      %s406 = smul.addr %s405, 8
      %s407 = scalar_lea.vmem %s0, %s406
      %p408 = pneg %p56
      %p409 = pneg %p53
      %p410 = scmp.lt.s32.totalorder %s28, 1
      %s411 = scalar_select %p410, %s28, 1
      %s412 = smul.addr %s411, 4
      %s413 = smul.addr %s412, 8
      %s414 = scalar_lea.vmem %s1, %s413
      %p415 = pneg %p82
      %p416 = pneg %p79
      %p417 = scmp.lt.s32.totalorder %s28, 1
      %s418 = scalar_select %p417, %s28, 1
      %s419 = smul.addr %s418, 4
      %s420 = smul.addr %s419, 8
      %s421 = scalar_lea.vmem %s2, %s420
      %p422 = pneg %p108
      %p423 = pneg %p105
      %p424 = pneg %p129
      %p425 = pneg %p126
      %p426 = pneg %p150
      %p427 = pneg %p147
      %p428 = pneg %p171
      %p429 = pneg %p168
      %p430 = pneg %p192
      %p431 = pneg %p189
      %p432 = pneg %p213
      %p433 = pneg %p210
      %p434 = pneg %p234
      %p435 = pneg %p231
      %p436 = pneg %p255
      %p437 = pneg %p252
      %p438 = pneg %p276
      %p439 = pneg %p273
      %p440 = pneg %p297
      %p441 = pneg %p294
      %p442 = pneg %p325
      %p443 = pneg %p322
      %s444 = smul.u32 2, %s27
      %p445 = scmp.lt.s32.totalorder %s28, 1
      %s446 = scalar_select %p445, %s28, 1
      %p447 = scmp.lt.s32.totalorder %s444, 1
      %s448 = scalar_select %p447, %s444, 1
      %s449 = smul.addr %s446, 2
      %s450 = sadd.s32 %s448, %s449
      %s451 = smul.addr %s450, 4
      %s452 = scalar_lea.vmem %s12, %s451
      %s453 = smul.u32 2, %s27
      %p454 = scmp.lt.s32.totalorder %s453, 1
      %s455 = scalar_select %p454, %s453, 1
      %s456 = smul.addr %s455, 8
      %s457 = scalar_lea.vmem %s0, %s456
      %s458 = smul.u32 2, %s27
      %p459 = scmp.lt.s32.totalorder %s28, 1
      %s460 = scalar_select %p459, %s28, 1
      %s461 = smul.addr %s460, 4
      %s462 = smul.addr %s461, 8
      %s463 = scalar_lea.vmem %s1, %s462
      %p464 = scmp.lt.s32.totalorder %s28, 1
      %s465 = scalar_select %p464, %s28, 1
      %s466 = smul.addr %s465, 4
      %s467 = smul.addr %s466, 8
      %s468 = scalar_lea.vmem %s2, %s467
      %s469 = smul.u32 2, %s27
      %p470 = scmp.lt.s32.totalorder %s28, 1
      %s471 = scalar_select %p470, %s28, 1
      %p472 = scmp.lt.s32.totalorder %s469, 1
      %s473 = scalar_select %p472, %s469, 1
      %s474 = smul.addr %s471, 2
      %s475 = sadd.s32 %s473, %s474
      %s476 = smul.addr %s475, 4
      %s477 = scalar_lea.vmem %s12, %s476
      %s478 = smul.u32 2, %s27
      %v479 = vld [vmem:[%s457] sm:$0xff]
      %v480 = vld [vmem:[%s457 + $0x8] sm:$0xff]
      %v481 = vld [vmem:[%s457 + $0x10] sm:$0xff]
      %v482 = vld [vmem:[%s457 + $0x18] sm:$0xff]
      %v483 = vld [vmem:[%s457 + $0x20] sm:$0xff]
      %v484 = vld [vmem:[%s457 + $0x28] sm:$0xff]
      %v485 = vld [vmem:[%s457 + $0x30] sm:$0xff]
      %v486 = vld [vmem:[%s457 + $0x38] sm:$0xff]
      %v487 = vld [vmem:[%s463] sm:$0xff]
      %v488 = vld [vmem:[%s463 + $0x8] sm:$0xff]
      %v489 = vld [vmem:[%s463 + $0x10] sm:$0xff]
      %v490 = vld [vmem:[%s463 + $0x18] sm:$0xff]
      %492 = vset.pattern.permute.xlu0 0
      %493 = vperm.xlu0 %492, %v487
      %v494 = vpop.permute.xlu0 %493
      %497 = vset.pattern.permute.xlu0 0
      %498 = vperm.xlu0 %497, %v488
      %v499 = vpop.permute.xlu0 %498
      %502 = vset.pattern.permute.xlu0 0
      %503 = vperm.xlu0 %502, %v489
      %v504 = vpop.permute.xlu0 %503
      %507 = vset.pattern.permute.xlu0 0
      %508 = vperm.xlu0 %507, %v490
      %v509 = vpop.permute.xlu0 %508
      %v511 = vadd.f32 %v479, %v494
      %v512 = vadd.f32 %v480, %v494
      %v513 = vadd.f32 %v481, %v499
      %v514 = vadd.f32 %v482, %v499
      %v515 = vadd.f32 %v483, %v504
      %v516 = vadd.f32 %v484, %v504
      %v517 = vadd.f32 %v485, %v509
      %v518 = vadd.f32 %v486, %v509
      %v519 = vmax.f32 %v511, 0.0
      %v520 = vmax.f32 %v512, 0.0
      %v521 = vmax.f32 %v513, 0.0
      %v522 = vmax.f32 %v514, 0.0
      %v523 = vmax.f32 %v515, 0.0
      %v524 = vmax.f32 %v516, 0.0
      %v525 = vmax.f32 %v517, 0.0
      %v526 = vmax.f32 %v518, 0.0
      %v527 = vld [vmem:[%s3] sm:$0xff]
      %v528 = vld [vmem:[%s3 + $0x8] sm:$0xff]
      %v529 = vld [vmem:[%s4] sm:$0xff]
      %v530 = vld [vmem:[%s4 + $0x8] sm:$0xff]
      %532 = vset.pattern.permute.xlu0 0
      %533 = vperm.xlu0 %532, %v529
      %v534 = vpop.permute.xlu0 %533
      %537 = vset.pattern.permute.xlu0 0
      %538 = vperm.xlu0 %537, %v530
      %v539 = vpop.permute.xlu0 %538
      %vm541 = vcmask 261120
      %v543 = vsel %vm541, %v527, 0
      %v546 = vsel %vm541, %v528, 0
      %548 = vmatpush.msra.mxu0 0.0
      %549 = vmatpush.msra.mxu0 0.0
      %550 = vmatpush.msra.mxu0 0.0
      %551 = vmatpush.msra.mxu0 0.0
      %552 = vmatpush.msra.mxu0 0.0
      %553 = vmatpush.msra.mxu0 0.0
      %554 = vmatpush.msra.mxu0 0.0
      %555 = vmatpush.msra.mxu0 0.0
      %556 = vmatpush.msra.mxu0 0.0
      %557 = vmatpush.msra.mxu0 0.0
      %558 = vmatpush.msra.mxu0 0.0
      %559 = vmatpush.msra.mxu0 0.0
      %560 = vmatpush.msra.mxu0 %v525
      %561 = vmatpush.msra.mxu0 %v523
      %562 = vmatpush.msra.mxu0 %v521
      %563 = vmatpush.msra.mxu0 %v519
      %564 = vmatmul.f32.gmra.mxu0 %v543
      %v565 = vpop.f32.mrf.mxu0
      %v566 = vadd.f32 %v534, %v565
      %567 = vmatmul.f32.gmra.mxu0 %v546
      %v568 = vpop.f32.mrf.mxu0
      %v569 = vadd.f32 %v539, %v568
      %570 = vdwg.mxu0
      %571 = vmatpush.msra.mxu0 0.0
      %572 = vmatpush.msra.mxu0 0.0
      %573 = vmatpush.msra.mxu0 0.0
      %574 = vmatpush.msra.mxu0 0.0
      %575 = vmatpush.msra.mxu0 0.0
      %576 = vmatpush.msra.mxu0 0.0
      %577 = vmatpush.msra.mxu0 0.0
      %578 = vmatpush.msra.mxu0 0.0
      %579 = vmatpush.msra.mxu0 0.0
      %580 = vmatpush.msra.mxu0 0.0
      %581 = vmatpush.msra.mxu0 0.0
      %582 = vmatpush.msra.mxu0 0.0
      %583 = vmatpush.msra.mxu0 %v526
      %584 = vmatpush.msra.mxu0 %v524
      %585 = vmatpush.msra.mxu0 %v522
      %586 = vmatpush.msra.mxu0 %v520
      %587 = vmatmul.f32.gmra.mxu0 %v543
      %v588 = vpop.f32.mrf.mxu0
      %v589 = vadd.f32 %v534, %v588
      %590 = vmatmul.f32.gmra.mxu0 %v546
      %v591 = vpop.f32.mrf.mxu0
      %v592 = vadd.f32 %v539, %v591
      %593 = vdwg.mxu0
      %v594 = vmax.f32 %v566, 0.0
      %v595 = vmax.f32 %v589, 0.0
      %v596 = vmax.f32 %v569, 0.0
      %v597 = vmax.f32 %v592, 0.0
      %v598 = vld [vmem:[%s5] sm:$0x7]
      %v599 = vld [vmem:[%s6] sm:$0x7]
      %601 = vset.pattern.permute.xlu0 0
      %602 = vperm.xlu0 %601, %v599
      %v603 = vpop.permute.xlu0 %602
      %vm605 = vcmask 130048
      %v607 = vsel %vm605, %v598, 0
      %609 = vmatpush.msra.mxu0 0.0
      %610 = vmatpush.msra.mxu0 0.0
      %611 = vmatpush.msra.mxu0 0.0
      %612 = vmatpush.msra.mxu0 0.0
      %613 = vmatpush.msra.mxu0 0.0
      %614 = vmatpush.msra.mxu0 0.0
      %615 = vmatpush.msra.mxu0 0.0
      %616 = vmatpush.msra.mxu0 0.0
      %617 = vmatpush.msra.mxu0 0.0
      %618 = vmatpush.msra.mxu0 0.0
      %619 = vmatpush.msra.mxu0 0.0
      %620 = vmatpush.msra.mxu0 0.0
      %621 = vmatpush.msra.mxu0 0.0
      %622 = vmatpush.msra.mxu0 0.0
      %623 = vmatpush.msra.mxu0 %v596
      %624 = vmatpush.msra.mxu0 %v594
      %625 = vmatmul.f32.gmra.mxu0 %v607
      %v626 = vpop.f32.mrf.mxu0
      %v627 = vadd.f32 %v603, %v626
      %628 = vdwg.mxu0
      %629 = vmatpush.msra.mxu0 0.0
      %630 = vmatpush.msra.mxu0 0.0
      %631 = vmatpush.msra.mxu0 0.0
      %632 = vmatpush.msra.mxu0 0.0
      %633 = vmatpush.msra.mxu0 0.0
      %634 = vmatpush.msra.mxu0 0.0
      %635 = vmatpush.msra.mxu0 0.0
      %636 = vmatpush.msra.mxu0 0.0
      %637 = vmatpush.msra.mxu0 0.0
      %638 = vmatpush.msra.mxu0 0.0
      %639 = vmatpush.msra.mxu0 0.0
      %640 = vmatpush.msra.mxu0 0.0
      %641 = vmatpush.msra.mxu0 0.0
      %642 = vmatpush.msra.mxu0 0.0
      %643 = vmatpush.msra.mxu0 %v597
      %644 = vmatpush.msra.mxu0 %v595
      %645 = vmatmul.f32.gmra.mxu0 %v607
      %v646 = vpop.f32.mrf.mxu0
      %v647 = vadd.f32 %v603, %v646
      %648 = vdwg.mxu0
      %v649 = vld [vmem:[%s7] sm:$0xff]
      %v650 = vld [vmem:[%s7 + $0x8] sm:$0xff]
      %v651 = vld [vmem:[%s7 + $0x10] sm:$0xff]
      %v652 = vld [vmem:[%s7 + $0x18] sm:$0xff]
      %654 = vset.pattern.permute.xlu0 0
      %655 = vperm.xlu0 %654, %v649
      %v656 = vpop.permute.xlu0 %655
      %659 = vset.pattern.permute.xlu0 0
      %660 = vperm.xlu0 %659, %v650
      %v661 = vpop.permute.xlu0 %660
      %664 = vset.pattern.permute.xlu0 0
      %665 = vperm.xlu0 %664, %v651
      %v666 = vpop.permute.xlu0 %665
      %669 = vset.pattern.permute.xlu0 0
      %670 = vperm.xlu0 %669, %v652
      %v671 = vpop.permute.xlu0 %670
      %v673 = vperm.slane %v627, 0
      %v674 = vperm.slane %v647, 0
      %v675 = vmul.f32 %v656, %v673
      %v676 = vmul.f32 %v656, %v674
      %v677 = vmul.f32 %v661, %v673
      %v678 = vmul.f32 %v661, %v674
      %v679 = vmul.f32 %v666, %v673
      %v680 = vmul.f32 %v666, %v674
      %v681 = vmul.f32 %v671, %v673
      %v682 = vmul.f32 %v671, %v674
      %683 = vset.pattern.permute.xlu0 1
      %684 = vperm.xlu0 %683, %v649
      %v685 = vpop.permute.xlu0 %684
      %687 = vset.pattern.permute.xlu0 1
      %688 = vperm.xlu0 %687, %v650
      %v689 = vpop.permute.xlu0 %688
      %691 = vset.pattern.permute.xlu0 1
      %692 = vperm.xlu0 %691, %v651
      %v693 = vpop.permute.xlu0 %692
      %695 = vset.pattern.permute.xlu0 1
      %696 = vperm.xlu0 %695, %v652
      %v697 = vpop.permute.xlu0 %696
      %v699 = vperm.slane %v627, 1
      %v700 = vperm.slane %v647, 1
      %v701 = vmul.f32 %v685, %v699
      %v702 = vmul.f32 %v685, %v700
      %v703 = vmul.f32 %v689, %v699
      %v704 = vmul.f32 %v689, %v700
      %v705 = vmul.f32 %v693, %v699
      %v706 = vmul.f32 %v693, %v700
      %v707 = vmul.f32 %v697, %v699
      %v708 = vmul.f32 %v697, %v700
      %v709 = vadd.f32 %v675, %v701
      %v710 = vadd.f32 %v676, %v702
      %v711 = vadd.f32 %v677, %v703
      %v712 = vadd.f32 %v678, %v704
      %v713 = vadd.f32 %v679, %v705
      %v714 = vadd.f32 %v680, %v706
      %v715 = vadd.f32 %v681, %v707
      %v716 = vadd.f32 %v682, %v708
      %717 = vset.pattern.permute.xlu0 2
      %718 = vperm.xlu0 %717, %v649
      %v719 = vpop.permute.xlu0 %718
      %721 = vset.pattern.permute.xlu0 2
      %722 = vperm.xlu0 %721, %v650
      %v723 = vpop.permute.xlu0 %722
      %725 = vset.pattern.permute.xlu0 2
      %726 = vperm.xlu0 %725, %v651
      %v727 = vpop.permute.xlu0 %726
      %729 = vset.pattern.permute.xlu0 2
      %730 = vperm.xlu0 %729, %v652
      %v731 = vpop.permute.xlu0 %730
      %v733 = vperm.slane %v627, 2
      %v734 = vperm.slane %v647, 2
      %v735 = vmul.f32 %v719, %v733
      %v736 = vmul.f32 %v719, %v734
      %v737 = vmul.f32 %v723, %v733
      %v738 = vmul.f32 %v723, %v734
      %v739 = vmul.f32 %v727, %v733
      %v740 = vmul.f32 %v727, %v734
      %v741 = vmul.f32 %v731, %v733
      %v742 = vmul.f32 %v731, %v734
      %v743 = vadd.f32 %v709, %v735
      %v744 = vadd.f32 %v710, %v736
      %v745 = vadd.f32 %v711, %v737
      %v746 = vadd.f32 %v712, %v738
      %v747 = vadd.f32 %v713, %v739
      %v748 = vadd.f32 %v714, %v740
      %v749 = vadd.f32 %v715, %v741
      %v750 = vadd.f32 %v716, %v742
      %v751 = vld [vmem:[%s468] sm:$0xff]
      %v752 = vld [vmem:[%s468 + $0x8] sm:$0xff]
      %v753 = vld [vmem:[%s468 + $0x10] sm:$0xff]
      %v754 = vld [vmem:[%s468 + $0x18] sm:$0xff]
      %756 = vset.pattern.permute.xlu0 0
      %757 = vperm.xlu0 %756, %v751
      %v758 = vpop.permute.xlu0 %757
      %761 = vset.pattern.permute.xlu0 0
      %762 = vperm.xlu0 %761, %v752
      %v763 = vpop.permute.xlu0 %762
      %766 = vset.pattern.permute.xlu0 0
      %767 = vperm.xlu0 %766, %v753
      %v768 = vpop.permute.xlu0 %767
      %771 = vset.pattern.permute.xlu0 0
      %772 = vperm.xlu0 %771, %v754
      %v773 = vpop.permute.xlu0 %772
      %v775 = vadd.f32 %v743, %v758
      %v776 = vadd.f32 %v744, %v758
      %v777 = vadd.f32 %v745, %v763
      %v778 = vadd.f32 %v746, %v763
      %v779 = vadd.f32 %v747, %v768
      %v780 = vadd.f32 %v748, %v768
      %v781 = vadd.f32 %v749, %v773
      %v782 = vadd.f32 %v750, %v773
      %v783 = vmax.f32 %v775, 0.0
      %v784 = vmax.f32 %v776, 0.0
      %v785 = vmax.f32 %v777, 0.0
      %v786 = vmax.f32 %v778, 0.0
      %v787 = vmax.f32 %v779, 0.0
      %v788 = vmax.f32 %v780, 0.0
      %v789 = vmax.f32 %v781, 0.0
      %v790 = vmax.f32 %v782, 0.0
      %v791 = vld [vmem:[%s8] sm:$0xff]
      %v792 = vld [vmem:[%s8 + $0x8] sm:$0xff]
      %v793 = vld [vmem:[%s9] sm:$0xff]
      %v794 = vld [vmem:[%s9 + $0x8] sm:$0xff]
      %796 = vset.pattern.permute.xlu0 0
      %797 = vperm.xlu0 %796, %v793
      %v798 = vpop.permute.xlu0 %797
      %801 = vset.pattern.permute.xlu0 0
      %802 = vperm.xlu0 %801, %v794
      %v803 = vpop.permute.xlu0 %802
      %v806 = vsel %vm541, %v791, 0
      %v809 = vsel %vm541, %v792, 0
      %811 = vmatpush.msra.mxu0 0.0
      %812 = vmatpush.msra.mxu0 0.0
      %813 = vmatpush.msra.mxu0 0.0
      %814 = vmatpush.msra.mxu0 0.0
      %815 = vmatpush.msra.mxu0 0.0
      %816 = vmatpush.msra.mxu0 0.0
      %817 = vmatpush.msra.mxu0 0.0
      %818 = vmatpush.msra.mxu0 0.0
      %819 = vmatpush.msra.mxu0 0.0
      %820 = vmatpush.msra.mxu0 0.0
      %821 = vmatpush.msra.mxu0 0.0
      %822 = vmatpush.msra.mxu0 0.0
      %823 = vmatpush.msra.mxu0 %v789
      %824 = vmatpush.msra.mxu0 %v787
      %825 = vmatpush.msra.mxu0 %v785
      %826 = vmatpush.msra.mxu0 %v783
      %827 = vmatmul.f32.gmra.mxu0 %v806
      %v828 = vpop.f32.mrf.mxu0
      %v829 = vadd.f32 %v798, %v828
      %830 = vmatmul.f32.gmra.mxu0 %v809
      %v831 = vpop.f32.mrf.mxu0
      %v832 = vadd.f32 %v803, %v831
      %833 = vdwg.mxu0
      %834 = vmatpush.msra.mxu0 0.0
      %835 = vmatpush.msra.mxu0 0.0
      %836 = vmatpush.msra.mxu0 0.0
      %837 = vmatpush.msra.mxu0 0.0
      %838 = vmatpush.msra.mxu0 0.0
      %839 = vmatpush.msra.mxu0 0.0
      %840 = vmatpush.msra.mxu0 0.0
      %841 = vmatpush.msra.mxu0 0.0
      %842 = vmatpush.msra.mxu0 0.0
      %843 = vmatpush.msra.mxu0 0.0
      %844 = vmatpush.msra.mxu0 0.0
      %845 = vmatpush.msra.mxu0 0.0
      %846 = vmatpush.msra.mxu0 %v790
      %847 = vmatpush.msra.mxu0 %v788
      %848 = vmatpush.msra.mxu0 %v786
      %849 = vmatpush.msra.mxu0 %v784
      %850 = vmatmul.f32.gmra.mxu0 %v806
      %v851 = vpop.f32.mrf.mxu0
      %v852 = vadd.f32 %v798, %v851
      %853 = vmatmul.f32.gmra.mxu0 %v809
      %v854 = vpop.f32.mrf.mxu0
      %v855 = vadd.f32 %v803, %v854
      %856 = vdwg.mxu0
      %v857 = vmax.f32 %v829, 0.0
      %v858 = vmax.f32 %v852, 0.0
      %v859 = vmax.f32 %v832, 0.0
      %v860 = vmax.f32 %v855, 0.0
      %v861 = vld [vmem:[%s10] sm:$0x7]
      %v862 = vld [vmem:[%s11] sm:$0x7]
      %864 = vset.pattern.permute.xlu0 0
      %865 = vperm.xlu0 %864, %v862
      %v866 = vpop.permute.xlu0 %865
      %v869 = vsel %vm605, %v861, 0
      %871 = vmatpush.msra.mxu0 0.0
      %872 = vmatpush.msra.mxu0 0.0
      %873 = vmatpush.msra.mxu0 0.0
      %874 = vmatpush.msra.mxu0 0.0
      %875 = vmatpush.msra.mxu0 0.0
      %876 = vmatpush.msra.mxu0 0.0
      %877 = vmatpush.msra.mxu0 0.0
      %878 = vmatpush.msra.mxu0 0.0
      %879 = vmatpush.msra.mxu0 0.0
      %880 = vmatpush.msra.mxu0 0.0
      %881 = vmatpush.msra.mxu0 0.0
      %882 = vmatpush.msra.mxu0 0.0
      %883 = vmatpush.msra.mxu0 0.0
      %884 = vmatpush.msra.mxu0 0.0
      %885 = vmatpush.msra.mxu0 %v859
      %886 = vmatpush.msra.mxu0 %v857
      %887 = vmatmul.f32.gmra.mxu0 %v869
      %v888 = vpop.f32.mrf.mxu0
      %v889 = vadd.f32 %v866, %v888
      %890 = vdwg.mxu0
      %891 = vmatpush.msra.mxu0 0.0
      %892 = vmatpush.msra.mxu0 0.0
      %893 = vmatpush.msra.mxu0 0.0
      %894 = vmatpush.msra.mxu0 0.0
      %895 = vmatpush.msra.mxu0 0.0
      %896 = vmatpush.msra.mxu0 0.0
      %897 = vmatpush.msra.mxu0 0.0
      %898 = vmatpush.msra.mxu0 0.0
      %899 = vmatpush.msra.mxu0 0.0
      %900 = vmatpush.msra.mxu0 0.0
      %901 = vmatpush.msra.mxu0 0.0
      %902 = vmatpush.msra.mxu0 0.0
      %903 = vmatpush.msra.mxu0 0.0
      %904 = vmatpush.msra.mxu0 0.0
      %905 = vmatpush.msra.mxu0 %v860
      %906 = vmatpush.msra.mxu0 %v858
      %907 = vmatmul.f32.gmra.mxu0 %v869
      %v908 = vpop.f32.mrf.mxu0
      %v909 = vadd.f32 %v866, %v908
      %910 = vdwg.mxu0
      %v913 = vrot.slane %v909, 4
      %vm914 = vcmask 1043456
      %v915 = vsel %vm914, %v889, %v913
      %917 = vst [vmem:[%s477] sm:$0x77] %v915
      %s918 = smul.u32 2, %s27
      %p919 = scmp.lt.s32.totalorder %s28, 1
      %s920 = scalar_select %p919, %s28, 1
      %p921 = scmp.lt.s32.totalorder %s918, 1
      %s922 = scalar_select %p921, %s918, 1
      %s923 = smul.addr %s920, 2
      %s924 = sadd.s32 %s922, %s923
      %s925 = smul.addr %s924, 4
      %s926 = scalar_lea.vmem %s12, %s925
      // Predicated region
      $region69: #{tpu_custom_call.1} parent=67 // pred_check
        %p927 = pneg %p322
      $region70: #{tpu_custom_call.1} parent=67 // pred_check_branch
        %929 = sbr.rel (%p927) target = $region72
      $region71: #{tpu_custom_call.1} parent=67 // pred_region
        %s930 = smul.u32 2, %s27
      $region72: #{tpu_custom_call.1} parent=67 // pred_fallthru
        _
    $region68: #{tpu_custom_call.1} parent=5 // pred_fallthru
      _
    %p931 = scmp.le.s32.totalorder 2, %s18
    // Predicated region
    $region73: #{tpu_custom_call.1} parent=5 // pred_check
      %p932 = pneg %p931
    $region74: #{tpu_custom_call.1} parent=5 // pred_check_branch
      %934 = sbr.rel (%p932) target = $region76
    $region75: #{tpu_custom_call.1} parent=5 // pred_region
      %s935 = ssub.s32 %s18, 2
      // Predicated region
      $region77: #{tpu_custom_call.1} parent=75 // pred_check
        %p936 = pneg %p328
      $region78: #{tpu_custom_call.1} parent=75 // pred_check_branch
        %938 = sbr.rel (%p936) target = $region80
      $region79: #{tpu_custom_call.1} parent=75 // pred_region
        %s939 = smul.u32 2, %s29
        %p940 = scmp.lt.s32.totalorder %s30, 1
        %s941 = scalar_select %p940, %s30, 1
        %p942 = scmp.lt.s32.totalorder %s939, 1
        %s943 = scalar_select %p942, %s939, 1
        %s944 = smul.addr %s941, 2
        %s945 = sadd.s32 %s943, %s944
        %s946 = smul.addr %s945, 4
        %s947 = scalar_lea.vmem %s12, %s946
      $region80: #{tpu_custom_call.1} parent=75 // pred_fallthru
        _
    $region76: #{tpu_custom_call.1} parent=5 // pred_fallthru
      _
  $region6: #{tpu_custom_call.1} parent=0 // loop_footer
    %s22 = sadd.s32 1, %s18
  $region7: #{tpu_custom_call.1} parent=0 // loop_footer_branch
    %17 = sbr.rel target = $region3
  $region8: #{tpu_custom_call.1} parent=0 // loop_exit
    _

</llo_original>
